<compile_context>
chip_gen: v6e
topology: v6e:2x2x1
jax: 0.10.0
libtpu: 0.0.40
codegen_flags: <defaults>
</compile_context>

<pallas_src>
import math

import jax
import jax.numpy as jnp
from jax.experimental import pallas as pl
from jax.experimental.pallas import tpu as pltpu


def _round_up(n, m):
    return ((n + m - 1) // m) * m


def _cdiv(a, b):
    return (a + b - 1) // b


def fc_decoder_kernel(x_ref, w1_ref, b1_ref, w2_ref, b2_ref, o_ref):
    # Layer 1: cast x to the weight dtype so bf16 weights hit the native bf16
    # MXU path (with f32 weights the cast is a no-op).  Accumulate in f32.
    h = jnp.dot(x_ref[...].astype(w1_ref.dtype), w1_ref[...],
                preferred_element_type=jnp.float32)
    # Bias + ReLU in f32 on the VPU (v5e VPU has no bf16 elementwise).
    h = jnp.maximum(h + b1_ref[...].astype(jnp.float32), 0.0)
    # Layer 2: cast h to the weight dtype for the same reason.
    out = jnp.dot(h.astype(w2_ref.dtype), w2_ref[...],
                  preferred_element_type=jnp.float32)
    o_ref[...] = (out + b2_ref[...].astype(jnp.float32)).astype(o_ref.dtype)


def pad_fc_decoder_params(params, *, hidden, out_dim):
    """Zero-pad ragged feature dims to lane multiples (128). Results unchanged."""
    w1, b1, w2, b2 = params
    h_pad = _round_up(hidden, 128)   # 250 -> 256
    o_pad = _round_up(out_dim, 128)  # 168 -> 256
    w1p = jnp.pad(w1, ((0, 0), (0, h_pad - hidden)))
    b1p = jnp.pad(b1, ((0, 0), (0, h_pad - hidden)))
    w2p = jnp.pad(w2, ((0, h_pad - hidden), (0, o_pad - out_dim)))
    b2p = jnp.pad(b2, ((0, 0), (0, o_pad - out_dim)))
    return w1p, b1p, w2p, b2p


def _batch_tiling(B, *, tm_cap=1024):
    """Tile-count-first sizing: minimal batch padding, >=2 tiles when possible.

    Pads B only to a multiple of 8 (sublane), then chooses the number of tiles
    so that (a) each tile is at most tm_cap rows and (b) there are at least two
    tiles whenever the padded batch allows it (keeps both v7x TensorCores busy
    via dimension_semantics=("parallel",); harmless no-op on v5e/v6e).
    """
    b8 = _round_up(max(B, 1), 8)
    nt = _cdiv(b8, tm_cap)
    if b8 >= 16:
        nt = max(nt, 2)
    tm = _round_up(_cdiv(b8, nt), 8)
    b_pad = nt * tm
    return tm, b_pad, nt


def fc_decoder_forward_flat(x, padded_params, *, out_dtype=jnp.float32):
    """Runs the Pallas kernel; returns the padded lane-dense (B_pad, o_pad) slab.

    Consumers that can read the padded layout directly should use this and
    slice lazily — it avoids a full-output HBM round trip for the reshape.
    """
    w1p, b1p, w2p, b2p = padded_params
    B, latent_dim = x.shape
    h_pad = w1p.shape[1]
    o_pad = w2p.shape[1]

    tm, b_pad, nt = _batch_tiling(B)
    if b_pad != B:
        x = jnp.pad(x, ((0, b_pad - B), (0, 0)))

    grid = (nt,)

    out_bytes = b_pad * o_pad * jnp.dtype(out_dtype).itemsize
    bytes_accessed = (x.nbytes + w1p.nbytes + b1p.nbytes + w2p.nbytes
                      + b2p.nbytes + out_bytes)
    cost = pl.CostEstimate(
        flops=2 * b_pad * (latent_dim * h_pad + h_pad * o_pad),
        transcendentals=0,
        bytes_accessed=bytes_accessed,
    )

    flat = pl.pallas_call(
        fc_decoder_kernel,
        out_shape=jax.ShapeDtypeStruct((b_pad, o_pad), out_dtype),
        grid=grid,
        in_specs=[
            # x: tiled over the batch grid axis (double-buffered by Pallas).
            pl.BlockSpec((tm, latent_dim), lambda i: (i, 0)),
            # Weights / biases: same block for every grid step -> VMEM-resident,
            # DMA'd from HBM exactly once.
            pl.BlockSpec((latent_dim, h_pad), lambda i: (0, 0)),
            pl.BlockSpec((1, h_pad), lambda i: (0, 0)),
            pl.BlockSpec((h_pad, o_pad), lambda i: (0, 0)),
            pl.BlockSpec((1, o_pad), lambda i: (0, 0)),
        ],
        out_specs=pl.BlockSpec((tm, o_pad), lambda i: (i, 0)),
        compiler_params=pltpu.CompilerParams(
            # Batch tiles are independent -> shard across both TCs on v7x.
            dimension_semantics=("parallel",),
        ),
        cost_estimate=cost,
    )(x, w1p, b1p, w2p, b2p)
    return flat


def fc_decoder_forward(x, padded_params, *, seq_len, alphabet_size,
                       out_dtype=jnp.float32):
    """Full forward: kernel + torch-equivalent .view(B, alphabet_size, seq_len)."""
    B = x.shape[0]
    out_dim = seq_len * alphabet_size
    flat = fc_decoder_forward_flat(x, padded_params, out_dtype=out_dtype)
    # Wrapper-side slice/reshape (separate XLA op).  For perf-critical large-B
    # paths, prefer fc_decoder_forward_flat and defer this to the consumer.
    return flat[:B, :out_dim].reshape(B, alphabet_size, seq_len)


def init_fc_decoder_params(key, *, latent_dim, hidden, seq_len, alphabet_size,
                           dtype=jnp.float32):
    """nn.Linear-style init U(-1/sqrt(fan_in), 1/sqrt(fan_in)).

    Weights are stored (in_features, out_features) so the kernel computes
    x @ W + b.  Pass dtype=jnp.bfloat16 to halve weight DMA and use the native
    bf16 MXU path (accumulation in the kernel stays f32).
    """
    out_dim = seq_len * alphabet_size
    k1, k2, k3, k4 = jax.random.split(key, 4)
    bound1 = 1.0 / math.sqrt(latent_dim)
    bound2 = 1.0 / math.sqrt(hidden)
    w1 = jax.random.uniform(k1, (latent_dim, hidden), jnp.float32, -bound1, bound1)
    b1 = jax.random.uniform(k2, (1, hidden), jnp.float32, -bound1, bound1)
    w2 = jax.random.uniform(k3, (hidden, out_dim), jnp.float32, -bound2, bound2)
    b2 = jax.random.uniform(k4, (1, out_dim), jnp.float32, -bound2, bound2)
    return tuple(p.astype(dtype) for p in (w1, b1, w2, b2))


def fc_decoder_reference(x, params):
    """Plain-JAX reference (unpadded, f32) for correctness checking."""
    w1, b1, w2, b2 = (p.astype(jnp.float32) for p in params)
    h = jnp.maximum(x @ w1 + b1, 0.0)
    return h @ w2 + b2


if __name__ == "__main__":
    # Small shapes consistent with the module defaults.
    batch = 2
    latent_dim = 32
    hidden = 250            # decoder_hidden=[250]
    seq_len = 8
    alphabet_size = 21      # default alphabet_size
    out_dim = seq_len * alphabet_size
    # decoder_dropout=[0] -> no dropout layer; n_conditions=0.
    # NOTE: torch does y.view(B, alphabet_size, seq_len); kernel + reference
    # both reproduce that row-major view.

    key = jax.random.PRNGKey(0)
    kx, kp = jax.random.split(key)
    x = jax.random.normal(kx, (batch, latent_dim), jnp.float32)

    # --- f32 path: exact-match check against the pure-JAX reference. ---
    params_f32 = init_fc_decoder_params(
        kp, latent_dim=latent_dim, hidden=hidden,
        seq_len=seq_len, alphabet_size=alphabet_size, dtype=jnp.float32)
    padded_f32 = pad_fc_decoder_params(params_f32, hidden=hidden, out_dim=out_dim)

    out = fc_decoder_forward(x, padded_f32,
                             seq_len=seq_len, alphabet_size=alphabet_size)
    out = jax.block_until_ready(out)

    ref = fc_decoder_reference(x, params_f32).reshape(batch, alphabet_size, seq_len)
    assert out.shape == (batch, alphabet_size, seq_len), out.shape
    assert jnp.allclose(out, ref, atol=1e-4, rtol=1e-5), "f32 mismatch vs reference"

    # --- bf16 weights + bf16 output path: looser tolerance (quantization). ---
    params_bf16 = tuple(p.astype(jnp.bfloat16) for p in params_f32)
    padded_bf16 = pad_fc_decoder_params(params_bf16, hidden=hidden, out_dim=out_dim)
    out_bf16 = fc_decoder_forward(x, padded_bf16,
                                  seq_len=seq_len, alphabet_size=alphabet_size,
                                  out_dtype=jnp.bfloat16)
    out_bf16 = jax.block_until_ready(out_bf16)
    assert out_bf16.dtype == jnp.bfloat16
    assert jnp.allclose(out_bf16.astype(jnp.float32), ref, atol=5e-2, rtol=5e-2), \
        "bf16 mismatch vs reference (beyond quantization tolerance)"

    # Larger-batch sanity check: exercises >=2 grid tiles and batch padding.
    xb = jax.random.normal(jax.random.PRNGKey(1), (260, latent_dim), jnp.float32)
    out_b = fc_decoder_forward(xb, padded_f32,
                               seq_len=seq_len, alphabet_size=alphabet_size)
    out_b = jax.block_until_ready(out_b)
    ref_b = fc_decoder_reference(xb, params_f32).reshape(260, alphabet_size, seq_len)
    assert jnp.allclose(out_b, ref_b, atol=1e-4, rtol=1e-5), "batch=260 mismatch"

    print("KERNEL_OK")
</pallas_src>

<mosaic_0001>
module attributes {stable_mosaic.version = 11 : i64} {
  func.func @fc_decoder_kernel(%arg0: i32, %arg1: memref<8x32xf32, #tpu.memory_space<vmem>>, %arg2: memref<32x256xf32, #tpu.memory_space<vmem>>, %arg3: memref<1x256xf32, #tpu.memory_space<vmem>>, %arg4: memref<256x256xf32, #tpu.memory_space<vmem>>, %arg5: memref<1x256xf32, #tpu.memory_space<vmem>>, %arg6: memref<8x256xf32, #tpu.memory_space<vmem>>) attributes {dimension_semantics = [#tpu.dimension_semantics<parallel>], iteration_bounds = array<i64: 1>, scalar_prefetch = 0 : i64, scratch_operands = 0 : i64, tpu.core_type = #tpu.core_type<tc>, window_params = [{transform_indices = @transform_0, window_bounds = array<i64: 8, 32>}, {pipeline_mode = #tpu.pipeline_mode<synchronous>, transform_indices = @transform_1, window_bounds = array<i64: 32, 256>}, {pipeline_mode = #tpu.pipeline_mode<synchronous>, transform_indices = @transform_2, window_bounds = array<i64: 1, 256>}, {pipeline_mode = #tpu.pipeline_mode<synchronous>, transform_indices = @transform_3, window_bounds = array<i64: 256, 256>}, {pipeline_mode = #tpu.pipeline_mode<synchronous>, transform_indices = @transform_4, window_bounds = array<i64: 1, 256>}, {transform_indices = @transform_5, window_bounds = array<i64: 8, 256>}]} {
    %c0 = arith.constant 0 : index
    %c0_0 = arith.constant 0 : index
    %0 = vector.load %arg1[%c0, %c0_0] : memref<8x32xf32, #tpu.memory_space<vmem>>, vector<8x32xf32>
    %c0_1 = arith.constant 0 : index
    %c0_2 = arith.constant 0 : index
    %1 = vector.load %arg2[%c0_1, %c0_2] : memref<32x256xf32, #tpu.memory_space<vmem>>, vector<32x256xf32>
    %cst = arith.constant dense<0.000000e+00> : vector<8x256xf32>
    %2 = tpu.matmul %0, %1, %cst {dimension_numbers = #tpu.dot_dimension_numbers<[1], [0], [0], [1], [0, 0, 1, 1], [], []>} : vector<8x32xf32>, vector<32x256xf32>, vector<8x256xf32> -> vector<8x256xf32>
    %c0_3 = arith.constant 0 : index
    %c0_4 = arith.constant 0 : index
    %3 = vector.load %arg3[%c0_3, %c0_4] : memref<1x256xf32, #tpu.memory_space<vmem>>, vector<1x256xf32>
    %4 = vector.broadcast %3 : vector<1x256xf32> to vector<8x256xf32>
    %5 = arith.addf %2, %4 : vector<8x256xf32>
    %cst_5 = arith.constant 0.000000e+00 : f32
    %6 = vector.broadcast %cst_5 : f32 to vector<8x256xf32>
    %7 = arith.maximumf %5, %6 : vector<8x256xf32>
    %c0_6 = arith.constant 0 : index
    %c0_7 = arith.constant 0 : index
    %8 = vector.load %arg4[%c0_6, %c0_7] : memref<256x256xf32, #tpu.memory_space<vmem>>, vector<256x256xf32>
    %cst_8 = arith.constant dense<0.000000e+00> : vector<8x256xf32>
    %9 = tpu.matmul %7, %8, %cst_8 {dimension_numbers = #tpu.dot_dimension_numbers<[1], [0], [0], [1], [0, 0, 1, 1], [], []>} : vector<8x256xf32>, vector<256x256xf32>, vector<8x256xf32> -> vector<8x256xf32>
    %c0_9 = arith.constant 0 : index
    %c0_10 = arith.constant 0 : index
    %10 = vector.load %arg5[%c0_9, %c0_10] : memref<1x256xf32, #tpu.memory_space<vmem>>, vector<1x256xf32>
    %11 = vector.broadcast %10 : vector<1x256xf32> to vector<8x256xf32>
    %12 = arith.addf %9, %11 : vector<8x256xf32>
    %c0_11 = arith.constant 0 : index
    %c0_12 = arith.constant 0 : index
    %13 = vector.load %arg6[%c0_11, %c0_12] : memref<8x256xf32, #tpu.memory_space<vmem>>, vector<8x256xf32>
    tpu.vector_store %arg6[%c0_11, %c0_12], %12 {strides = array<i32>} : memref<8x256xf32, #tpu.memory_space<vmem>>, vector<8x256xf32>,
    return
  }
  func.func @transform_0(%arg0: i32) -> (i32, i32) {
    %c0_i32 = arith.constant 0 : i32
    %c0_i32_0 = arith.constant 0 : i32
    return %arg0, %c0_i32 : i32, i32
  }
  func.func @transform_1(%arg0: i32) -> (i32, i32) {
    %c0_i32 = arith.constant 0 : i32
    %c0_i32_0 = arith.constant 0 : i32
    %c0_i32_1 = arith.constant 0 : i32
    return %c0_i32, %c0_i32_0 : i32, i32
  }
  func.func @transform_2(%arg0: i32) -> (i32, i32) {
    %c0_i32 = arith.constant 0 : i32
    %c0_i32_0 = arith.constant 0 : i32
    %c0_i32_1 = arith.constant 0 : i32
    return %c0_i32, %c0_i32_0 : i32, i32
  }
  func.func @transform_3(%arg0: i32) -> (i32, i32) {
    %c0_i32 = arith.constant 0 : i32
    %c0_i32_0 = arith.constant 0 : i32
    %c0_i32_1 = arith.constant 0 : i32
    return %c0_i32, %c0_i32_0 : i32, i32
  }
  func.func @transform_4(%arg0: i32) -> (i32, i32) {
    %c0_i32 = arith.constant 0 : i32
    %c0_i32_0 = arith.constant 0 : i32
    %c0_i32_1 = arith.constant 0 : i32
    return %c0_i32, %c0_i32_0 : i32, i32
  }
  func.func @transform_5(%arg0: i32) -> (i32, i32) {
    %c0_i32 = arith.constant 0 : i32
    %c0_i32_0 = arith.constant 0 : i32
    return %arg0, %c0_i32 : i32, i32
  }
}

</mosaic_0001>

<llo_original>
// kernel: tpu_custom_call.1
$region0: #{tpu_custom_call.1}
  #allocation0 [shape = 'u32[]', space=smem, size = 0x4, offset = 0x4, fixed_abs, tag = 'smem constant byte address 0x4 - core index']
  #allocation1 [shape = 'u32[144,128]{1,0:T(1,128)}', space=vmem, size = 0x12000, scoped, tag = 'internal scratch']
  %s0 = inlined_call_operand.hbm [shape: f32[8,32], index: 0, kind: input, shape index: {}]
  %s1 = inlined_call_operand.hbm [shape: f32[32,256], index: 1, kind: input, shape index: {}]
  %s2 = inlined_call_operand.vmem [shape: f32[1,256], index: 2, kind: input, shape index: {}]
  %s3 = inlined_call_operand.hbm [shape: f32[256,256], index: 3, kind: input, shape index: {}]
  %s4 = inlined_call_operand.vmem [shape: f32[1,256], index: 4, kind: input, shape index: {}]
  %s5 = inlined_call_operand.hbm [shape: f32[8,256], index: 5, kind: output, shape index: {}]
  %s6 = sld [smem:[#allocation0]]
  $region42: #{tpu_custom_call.1} parent=0
    _
  %s8 = ssub.s32 1, %s6
  %s9 = scalar_select 0, %s8, %s6
  $region1: #{tpu_custom_call.1} parent=0
    #allocation2 [shape = 'u8[4096]{0}', space=vmem, size = 0x1000, scoped, tag = 'input window, operand 0, single buffered']
    #allocation3 [shape = 's32[1]{0}', space=sflag, size = 0x4, scoped, tag = 'scoped memory for tpu_custom_call.1']
    #allocation4 [shape = 's32[1]{0}', space=sflag, size = 0x4, scoped, tag = 'scoped memory for tpu_custom_call.1']
    #allocation5 [shape = 'u8[32768]{0}', space=vmem, size = 0x8000, scoped, tag = 'input window, operand 1, single buffered']
    #allocation6 [shape = 's32[1]{0}', space=sflag, size = 0x4, scoped, tag = 'scoped memory for tpu_custom_call.1']
    #allocation7 [shape = 'u8[262144]{0}', space=vmem, size = 0x40000, scoped, tag = 'input window, operand 3, single buffered']
    #allocation8 [shape = 'u8[8192]{0}', space=vmem, size = 0x2000, scoped, tag = 'output window, operand 0, single buffered']
    %10 = vsyncpa [#allocation3], 0
    %11 = vsyncpa [#allocation6], 0
    %12 = vsyncpa [#allocation4], 0
    // Predicated region
    $region2: #{tpu_custom_call.1} parent=1 // pred_check
      _
    $region3: #{tpu_custom_call.1} parent=1 // pred_check_branch
      %14 = sbr.rel (0) target = $region5
    $region4: #{tpu_custom_call.1} parent=1 // pred_region
      %s16 = ssub.s32 128, 128
      %17 = vsyncadd [#allocation3], %s16
      %s19 = sshll.u32 [#allocation2], 4
      %s20 = int_to_ptr.vmem [resolvable:$true] %s19
      %22 = dma.hbm_to_vmem [thread:$0]  %s0, 128, %s20, [#allocation3]
    $region5: #{tpu_custom_call.1} parent=1 // pred_fallthru
      _
    // Predicated region
    $region6: #{tpu_custom_call.1} parent=1 // pred_check
      _
    $region7: #{tpu_custom_call.1} parent=1 // pred_check_branch
      %24 = sbr.rel (0) target = $region9
    $region8: #{tpu_custom_call.1} parent=1 // pred_region
      %s26 = ssub.s32 1024, 1024
      %27 = vsyncadd [#allocation6], %s26
      %s28 = sshll.u32 [#allocation5], 4
      %s29 = int_to_ptr.vmem [resolvable:$true] %s28
      %34 = dma.hbm_to_vmem [thread:$0]  %s1, 1024, %s29, [#allocation6], 256, 256, 16
    $region9: #{tpu_custom_call.1} parent=1 // pred_fallthru
      _
    // Predicated region
    $region10: #{tpu_custom_call.1} parent=1 // pred_check
      _
    $region11: #{tpu_custom_call.1} parent=1 // pred_check_branch
      %36 = sbr.rel (0) target = $region13
    $region12: #{tpu_custom_call.1} parent=1 // pred_region
      _
    $region13: #{tpu_custom_call.1} parent=1 // pred_fallthru
      _
    // Predicated region
    $region14: #{tpu_custom_call.1} parent=1 // pred_check
      _
    $region15: #{tpu_custom_call.1} parent=1 // pred_check_branch
      %38 = sbr.rel (0) target = $region17
    $region16: #{tpu_custom_call.1} parent=1 // pred_region
      %s40 = ssub.s32 8192, 8192
      %41 = vsyncadd [#allocation6], %s40
      %s42 = sshll.u32 [#allocation7], 4
      %s43 = int_to_ptr.vmem [resolvable:$true] %s42
      %48 = dma.hbm_to_vmem [thread:$0]  %s3, 8192, %s43, [#allocation6], 256, 256, 16
    $region17: #{tpu_custom_call.1} parent=1 // pred_fallthru
      _
    // Predicated region
    $region18: #{tpu_custom_call.1} parent=1 // pred_check
      _
    $region19: #{tpu_custom_call.1} parent=1 // pred_check_branch
      %50 = sbr.rel (0) target = $region21
    $region20: #{tpu_custom_call.1} parent=1 // pred_region
      _
    $region21: #{tpu_custom_call.1} parent=1 // pred_fallthru
      _
    // Predicated region
    $region22: #{tpu_custom_call.1} parent=1 // pred_check
      _
    $region23: #{tpu_custom_call.1} parent=1 // pred_check_branch
      %52 = sbr.rel (0) target = $region25
    $region24: #{tpu_custom_call.1} parent=1 // pred_region
      %53 = dma.done [#allocation3], 128
    $region25: #{tpu_custom_call.1} parent=1 // pred_fallthru
      _
    // Predicated region
    $region26: #{tpu_custom_call.1} parent=1 // pred_check
      _
    $region27: #{tpu_custom_call.1} parent=1 // pred_check_branch
      %55 = sbr.rel (0) target = $region29
    $region28: #{tpu_custom_call.1} parent=1 // pred_region
      %56 = dma.done [#allocation6], 1024
    $region29: #{tpu_custom_call.1} parent=1 // pred_fallthru
      _
    // Predicated region
    $region30: #{tpu_custom_call.1} parent=1 // pred_check
      _
    $region31: #{tpu_custom_call.1} parent=1 // pred_check_branch
      %58 = sbr.rel (0) target = $region33
    $region32: #{tpu_custom_call.1} parent=1 // pred_region
      %59 = dma.done [#allocation6], 8192
    $region33: #{tpu_custom_call.1} parent=1 // pred_fallthru
      _
    %v60 = vld [vmem:[#allocation2] sm:$0xff]
    %v61 = vld [vmem:[#allocation5] sm:$0xff]
    %v62 = vld [vmem:[#allocation5 + $0x8] sm:$0xff]
    %v63 = vld [vmem:[#allocation5 + $0x10] sm:$0xff]
    %v64 = vld [vmem:[#allocation5 + $0x18] sm:$0xff]
    %v65 = vld [vmem:[#allocation5 + $0x20] sm:$0xff]
    %v66 = vld [vmem:[#allocation5 + $0x28] sm:$0xff]
    %v67 = vld [vmem:[#allocation5 + $0x30] sm:$0xff]
    %v68 = vld [vmem:[#allocation5 + $0x38] sm:$0xff]
    %v69 = vld [vmem:[%s2] sm:$0x3]
    %v71 = vlaneseq
    %v72 = vshrl.u32 %v71, 7
    %v73 = vsub.s32 0, %v72
    %v74 = vrot.slane %v69, %v73
    %v75 = vlaneseq
    %v76 = vshrl.u32 %v75, 7
    %v77 = vsub.s32 1, %v76
    %v78 = vrot.slane %v69, %v77
    %vm81 = vcmask 261120
    %v83 = vsel %vm81, %v60, 0
    %85 = vmatprep.subr.mxu0 0.0
    %86 = vmatpush1.msra.mxu0 0.0
    %87 = vmatprep.subr.mxu0 0.0
    %88 = vmatpush1.msra.mxu0 0.0
    %89 = vmatprep.subr.mxu0 0.0
    %90 = vmatpush1.msra.mxu0 0.0
    %91 = vmatprep.subr.mxu0 0.0
    %92 = vmatpush1.msra.mxu0 0.0
    %93 = vmatprep.subr.mxu0 0.0
    %94 = vmatpush1.msra.mxu0 0.0
    %95 = vmatprep.subr.mxu0 0.0
    %96 = vmatpush1.msra.mxu0 0.0
    %97 = vmatprep.subr.mxu0 0.0
    %98 = vmatpush1.msra.mxu0 0.0
    %99 = vmatprep.subr.mxu0 0.0
    %100 = vmatpush1.msra.mxu0 0.0
    %101 = vmatprep.subr.mxu0 0.0
    %102 = vmatpush1.msra.mxu0 0.0
    %103 = vmatprep.subr.mxu0 0.0
    %104 = vmatpush1.msra.mxu0 0.0
    %105 = vmatprep.subr.mxu0 0.0
    %106 = vmatpush1.msra.mxu0 0.0
    %107 = vmatprep.subr.mxu0 0.0
    %108 = vmatpush1.msra.mxu0 0.0
    %109 = vmatprep.subr.mxu0 %v68
    %110 = vmatpush1.msra.mxu0 %v67
    %111 = vmatprep.subr.mxu0 %v66
    %112 = vmatpush1.msra.mxu0 %v65
    %113 = vmatprep.subr.mxu0 %v64
    %114 = vmatpush1.msra.mxu0 %v63
    %115 = vmatprep.subr.mxu0 %v62
    %116 = vmatpush1.msra.mxu0 %v61
    %117 = vmatprep.subr.mxu0 0.0
    %118 = vmatpush2.msra.mxu0 0.0
    %119 = vmatprep.subr.mxu0 0.0
    %120 = vmatpush2.msra.mxu0 0.0
    %121 = vmatprep.subr.mxu0 0.0
    %122 = vmatpush2.msra.mxu0 0.0
    %123 = vmatprep.subr.mxu0 0.0
    %124 = vmatpush2.msra.mxu0 0.0
    %125 = vmatprep.subr.mxu0 0.0
    %126 = vmatpush2.msra.mxu0 0.0
    %127 = vmatprep.subr.mxu0 0.0
    %128 = vmatpush2.msra.mxu0 0.0
    %129 = vmatprep.subr.mxu0 0.0
    %130 = vmatpush2.msra.mxu0 0.0
    %131 = vmatprep.subr.mxu0 0.0
    %132 = vmatpush2.msra.mxu0 0.0
    %133 = vmatprep.subr.mxu0 0.0
    %134 = vmatpush2.msra.mxu0 0.0
    %135 = vmatprep.subr.mxu0 0.0
    %136 = vmatpush2.msra.mxu0 0.0
    %137 = vmatprep.subr.mxu0 0.0
    %138 = vmatpush2.msra.mxu0 0.0
    %139 = vmatprep.subr.mxu0 0.0
    %140 = vmatpush2.msra.mxu0 0.0
    %141 = vmatprep.subr.mxu0 0.0
    %142 = vmatpush2.msra.mxu0 0.0
    %143 = vmatprep.subr.mxu0 0.0
    %144 = vmatpush2.msra.mxu0 0.0
    %145 = vmatprep.subr.mxu0 0.0
    %146 = vmatpush2.msra.mxu0 0.0
    %147 = vmatprep.subr.mxu0 0.0
    %148 = vmatpush2.msra.mxu0 0.0
    %149 = vmatprep.mubr.f32.mxu0 0.0
    %150 = vmatmul.mubr.f32.gmra.mxu0 %v83
    %v151 = vpop.f32.mrf.mxu0
    %v152 = vadd.f32 %v74, %v151
    %v153 = vpop.f32.mrf.mxu0
    %v154 = vadd.f32 %v78, %v153
    %155 = vdwg.mxu0
    %v156 = vmax.f32 %v152, 0.0
    %v157 = vmax.f32 %v154, 0.0
    %v158 = vld [vmem:[#allocation7] sm:$0xff]
    %v159 = vld [vmem:[#allocation7 + $0x8] sm:$0xff]
    %v160 = vld [vmem:[#allocation7 + $0x10] sm:$0xff]
    %v161 = vld [vmem:[#allocation7 + $0x18] sm:$0xff]
    %v162 = vld [vmem:[#allocation7 + $0x20] sm:$0xff]
    %v163 = vld [vmem:[#allocation7 + $0x28] sm:$0xff]
    %v164 = vld [vmem:[#allocation7 + $0x30] sm:$0xff]
    %v165 = vld [vmem:[#allocation7 + $0x38] sm:$0xff]
    %v166 = vld [vmem:[#allocation7 + $0x40] sm:$0xff]
    %v167 = vld [vmem:[#allocation7 + $0x48] sm:$0xff]
    %v168 = vld [vmem:[#allocation7 + $0x50] sm:$0xff]
    %v169 = vld [vmem:[#allocation7 + $0x58] sm:$0xff]
    %v170 = vld [vmem:[#allocation7 + $0x60] sm:$0xff]
    %v171 = vld [vmem:[#allocation7 + $0x68] sm:$0xff]
    %v172 = vld [vmem:[#allocation7 + $0x70] sm:$0xff]
    %v173 = vld [vmem:[#allocation7 + $0x78] sm:$0xff]
    %v174 = vld [vmem:[#allocation7 + $0x80] sm:$0xff]
    %v175 = vld [vmem:[#allocation7 + $0x88] sm:$0xff]
    %v176 = vld [vmem:[#allocation7 + $0x90] sm:$0xff]
    %v177 = vld [vmem:[#allocation7 + $0x98] sm:$0xff]
    %v178 = vld [vmem:[#allocation7 + $0xa0] sm:$0xff]
    %v179 = vld [vmem:[#allocation7 + $0xa8] sm:$0xff]
    %v180 = vld [vmem:[#allocation7 + $0xb0] sm:$0xff]
    %v181 = vld [vmem:[#allocation7 + $0xb8] sm:$0xff]
    %v182 = vld [vmem:[#allocation7 + $0xc0] sm:$0xff]
    %v183 = vld [vmem:[#allocation7 + $0xc8] sm:$0xff]
    %v184 = vld [vmem:[#allocation7 + $0xd0] sm:$0xff]
    %v185 = vld [vmem:[#allocation7 + $0xd8] sm:$0xff]
    %v186 = vld [vmem:[#allocation7 + $0xe0] sm:$0xff]
    %v187 = vld [vmem:[#allocation7 + $0xe8] sm:$0xff]
    %v188 = vld [vmem:[#allocation7 + $0xf0] sm:$0xff]
    %v189 = vld [vmem:[#allocation7 + $0xf8] sm:$0xff]
    %v190 = vld [vmem:[#allocation7 + $0x100] sm:$0xff]
    %v191 = vld [vmem:[#allocation7 + $0x108] sm:$0xff]
    %v192 = vld [vmem:[#allocation7 + $0x110] sm:$0xff]
    %v193 = vld [vmem:[#allocation7 + $0x118] sm:$0xff]
    %v194 = vld [vmem:[#allocation7 + $0x120] sm:$0xff]
    %v195 = vld [vmem:[#allocation7 + $0x128] sm:$0xff]
    %v196 = vld [vmem:[#allocation7 + $0x130] sm:$0xff]
    %v197 = vld [vmem:[#allocation7 + $0x138] sm:$0xff]
    %v198 = vld [vmem:[#allocation7 + $0x140] sm:$0xff]
    %v199 = vld [vmem:[#allocation7 + $0x148] sm:$0xff]
    %v200 = vld [vmem:[#allocation7 + $0x150] sm:$0xff]
    %v201 = vld [vmem:[#allocation7 + $0x158] sm:$0xff]
    %v202 = vld [vmem:[#allocation7 + $0x160] sm:$0xff]
    %v203 = vld [vmem:[#allocation7 + $0x168] sm:$0xff]
    %v204 = vld [vmem:[#allocation7 + $0x170] sm:$0xff]
    %v205 = vld [vmem:[#allocation7 + $0x178] sm:$0xff]
    %v206 = vld [vmem:[#allocation7 + $0x180] sm:$0xff]
    %v207 = vld [vmem:[#allocation7 + $0x188] sm:$0xff]
    %v208 = vld [vmem:[#allocation7 + $0x190] sm:$0xff]
    %v209 = vld [vmem:[#allocation7 + $0x198] sm:$0xff]
    %v210 = vld [vmem:[#allocation7 + $0x1a0] sm:$0xff]
    %v211 = vld [vmem:[#allocation7 + $0x1a8] sm:$0xff]
    %v212 = vld [vmem:[#allocation7 + $0x1b0] sm:$0xff]
    %v213 = vld [vmem:[#allocation7 + $0x1b8] sm:$0xff]
    %v214 = vld [vmem:[#allocation7 + $0x1c0] sm:$0xff]
    %v215 = vld [vmem:[#allocation7 + $0x1c8] sm:$0xff]
    %v216 = vld [vmem:[#allocation7 + $0x1d0] sm:$0xff]
    %v217 = vld [vmem:[#allocation7 + $0x1d8] sm:$0xff]
    %v218 = vld [vmem:[#allocation7 + $0x1e0] sm:$0xff]
    %v219 = vld [vmem:[#allocation7 + $0x1e8] sm:$0xff]
    %v220 = vld [vmem:[#allocation7 + $0x1f0] sm:$0xff]
    %v221 = vld [vmem:[#allocation7 + $0x1f8] sm:$0xff]
    %v222 = vld [vmem:[%s4] sm:$0x3]
    %v224 = vlaneseq
    %v225 = vshrl.u32 %v224, 7
    %v226 = vsub.s32 0, %v225
    %v227 = vrot.slane %v222, %v226
    %v228 = vlaneseq
    %v229 = vshrl.u32 %v228, 7
    %v230 = vsub.s32 1, %v229
    %v231 = vrot.slane %v222, %v230
    %234 = vmatprep.subr.mxu0 %v189
    %235 = vmatpush1.msra.mxu0 %v188
    %236 = vmatprep.subr.mxu0 %v187
    %237 = vmatpush1.msra.mxu0 %v186
    %238 = vmatprep.subr.mxu0 %v185
    %239 = vmatpush1.msra.mxu0 %v184
    %240 = vmatprep.subr.mxu0 %v183
    %241 = vmatpush1.msra.mxu0 %v182
    %242 = vmatprep.subr.mxu0 %v181
    %243 = vmatpush1.msra.mxu0 %v180
    %244 = vmatprep.subr.mxu0 %v179
    %245 = vmatpush1.msra.mxu0 %v178
    %246 = vmatprep.subr.mxu0 %v177
    %247 = vmatpush1.msra.mxu0 %v176
    %248 = vmatprep.subr.mxu0 %v175
    %249 = vmatpush1.msra.mxu0 %v174
    %250 = vmatprep.subr.mxu0 %v173
    %251 = vmatpush1.msra.mxu0 %v172
    %252 = vmatprep.subr.mxu0 %v171
    %253 = vmatpush1.msra.mxu0 %v170
    %254 = vmatprep.subr.mxu0 %v169
    %255 = vmatpush1.msra.mxu0 %v168
    %256 = vmatprep.subr.mxu0 %v167
    %257 = vmatpush1.msra.mxu0 %v166
    %258 = vmatprep.subr.mxu0 %v165
    %259 = vmatpush1.msra.mxu0 %v164
    %260 = vmatprep.subr.mxu0 %v163
    %261 = vmatpush1.msra.mxu0 %v162
    %262 = vmatprep.subr.mxu0 %v161
    %263 = vmatpush1.msra.mxu0 %v160
    %264 = vmatprep.subr.mxu0 %v159
    %265 = vmatpush1.msra.mxu0 %v158
    %266 = vmatprep.subr.mxu0 %v221
    %267 = vmatpush2.msra.mxu0 %v220
    %268 = vmatprep.subr.mxu0 %v219
    %269 = vmatpush2.msra.mxu0 %v218
    %270 = vmatprep.subr.mxu0 %v217
    %271 = vmatpush2.msra.mxu0 %v216
    %272 = vmatprep.subr.mxu0 %v215
    %273 = vmatpush2.msra.mxu0 %v214
    %274 = vmatprep.subr.mxu0 %v213
    %275 = vmatpush2.msra.mxu0 %v212
    %276 = vmatprep.subr.mxu0 %v211
    %277 = vmatpush2.msra.mxu0 %v210
    %278 = vmatprep.subr.mxu0 %v209
    %279 = vmatpush2.msra.mxu0 %v208
    %280 = vmatprep.subr.mxu0 %v207
    %281 = vmatpush2.msra.mxu0 %v206
    %282 = vmatprep.subr.mxu0 %v205
    %283 = vmatpush2.msra.mxu0 %v204
    %284 = vmatprep.subr.mxu0 %v203
    %285 = vmatpush2.msra.mxu0 %v202
    %286 = vmatprep.subr.mxu0 %v201
    %287 = vmatpush2.msra.mxu0 %v200
    %288 = vmatprep.subr.mxu0 %v199
    %289 = vmatpush2.msra.mxu0 %v198
    %290 = vmatprep.subr.mxu0 %v197
    %291 = vmatpush2.msra.mxu0 %v196
    %292 = vmatprep.subr.mxu0 %v195
    %293 = vmatpush2.msra.mxu0 %v194
    %294 = vmatprep.subr.mxu0 %v193
    %295 = vmatpush2.msra.mxu0 %v192
    %296 = vmatprep.subr.mxu0 %v191
    %297 = vmatpush2.msra.mxu0 %v190
    %298 = vmatprep.mubr.f32.mxu0 %v157
    %299 = vmatmul.mubr.f32.gmra.mxu0 %v156
    %v300 = vpop.f32.mrf.mxu0
    %v301 = vadd.f32 %v227, %v300
    %v302 = vpop.f32.mrf.mxu0
    %v303 = vadd.f32 %v231, %v302
    %304 = vdwg.mxu0
    %305 = vst [vmem:[#allocation8] sm:$0xff] %v301
    %306 = vst [vmem:[#allocation8 + $0x8] sm:$0xff] %v303
    // Predicated region
    $region34: #{tpu_custom_call.1} parent=1 // pred_check
      _
    $region35: #{tpu_custom_call.1} parent=1 // pred_check_branch
      %308 = sbr.rel (0) target = $region37
    $region36: #{tpu_custom_call.1} parent=1 // pred_region
      %s310 = ssub.s32 256, 256
      %311 = vsyncadd [#allocation4], %s310
      %s313 = sshll.u32 [#allocation8], 4
      %s314 = int_to_ptr.vmem [resolvable:$true] %s313
      %316 = dma.vmem_to_hbm [thread:$0]  %s314, 256, %s5, [#allocation4]
    $region37: #{tpu_custom_call.1} parent=1 // pred_fallthru
      _
    // Predicated region
    $region38: #{tpu_custom_call.1} parent=1 // pred_check
      _
    $region39: #{tpu_custom_call.1} parent=1 // pred_check_branch
      %318 = sbr.rel (0) target = $region41
    $region40: #{tpu_custom_call.1} parent=1 // pred_region
      %319 = dma.done [#allocation4], 256
    $region41: #{tpu_custom_call.1} parent=1 // pred_fallthru
      _
    %320 = vsyncpa [#allocation3], 1
    %321 = vsyncpa [#allocation6], 1
    %322 = vsyncpa [#allocation4], 1

</llo_original>
